<compile_context>
chip_gen: v5e
topology: v5e:2x2
jax: 0.10.0
libtpu: 0.0.40
codegen_flags: <defaults>
</compile_context>

<pallas_src>
import functools

import jax
import jax.numpy as jnp
from jax.experimental import pallas as pl
from jax.experimental.pallas import tpu as pltpu


def _round_up(x, m):
    return ((x + m - 1) // m) * m


def _self_output_kernel(x_ref, res_ref, w_ref, b_ref, gamma_ref, beta_ref, o_ref, *, eps):
    # Linear: y = x @ W^T + b.  w_ref holds W in PyTorch [out, in] layout; contract the
    # "in" axis of both operands directly on the MXU (no transpose materialized).
    y = jax.lax.dot_general(
        x_ref[...], w_ref[...],
        dimension_numbers=(((1,), (1,)), ((), ())),
        preferred_element_type=jnp.float32,
    )
    y = y + b_ref[...].astype(jnp.float32)

    # Dropout (eval) = identity, then residual add.
    y = y + res_ref[...].astype(jnp.float32)

    # LayerNorm (TF style: eps inside the sqrt), single-pass stats + rsqrt (EUP).
    h = y.shape[-1]
    inv_h = jnp.float32(1.0 / h)
    mean = jnp.sum(y, axis=-1, keepdims=True) * inv_h
    mean_sq = jnp.sum(y * y, axis=-1, keepdims=True) * inv_h
    var = jnp.maximum(mean_sq - mean * mean, 0.0)
    inv_std = jax.lax.rsqrt(var + jnp.float32(eps))
    out = (gamma_ref[...].astype(jnp.float32) * ((y - mean) * inv_std)
           + beta_ref[...].astype(jnp.float32))

    o_ref[...] = out.astype(o_ref.dtype)


def self_output(hidden_states, input_tensor, weight, bias, ln_weight, ln_bias,
                *, eps=1e-12, row_tile=256, matmul_dtype=jnp.bfloat16):
    """Fused dense + residual + LayerNorm.

    hidden_states, input_tensor: [B, S, H]
    weight: [H, H] in PyTorch Linear convention (y = x @ weight.T + bias)
    bias, ln_weight, ln_bias: [H]
    matmul_dtype: dtype for the MXU operands (None -> keep input dtype / full precision).
    """
    B, S, H = hidden_states.shape
    M = B * S
    out_dtype = hidden_states.dtype

    # Adaptive row tile: big tiles for real workloads, shrink (never below 8) for toy M.
    rt = min(int(row_tile), _round_up(M, 8))
    M_pad = _round_up(M, rt)

    x2d = hidden_states.reshape(M, H)
    r2d = input_tensor.reshape(M, H)
    if M_pad != M:
        pad = M_pad - M
        x2d = jnp.pad(x2d, ((0, pad), (0, 0)))
        r2d = jnp.pad(r2d, ((0, pad), (0, 0)))

    compute_dtype = matmul_dtype if matmul_dtype is not None else x2d.dtype
    x2d = x2d.astype(compute_dtype)
    w = weight.astype(compute_dtype)          # [H_out, H_in]; kernel contracts on H_in.
    b2d = bias.reshape(1, H).astype(jnp.float32)
    g2d = ln_weight.reshape(1, H).astype(jnp.float32)
    beta2d = ln_bias.reshape(1, H).astype(jnp.float32)

    # Explicit VMEM budget: double-buffered row tiles + resident weight + f32 intermediate.
    def _isz(dt):
        return jnp.dtype(dt).itemsize

    needed = (2 * rt * H * _isz(compute_dtype)        # x tiles
              + 2 * rt * H * _isz(r2d.dtype)          # residual tiles
              + 2 * rt * H * _isz(out_dtype)          # output tiles
              + 2 * H * H * _isz(compute_dtype)       # weight (budget 2 buffers)
              + 6 * H * 4                             # bias / gamma / beta
              + rt * H * 4                            # f32 intermediate y
              + (4 << 20))                            # slack
    vmem_limit_bytes = int(min(max(needed, 32 << 20), 64 << 20))

    kernel = functools.partial(_self_output_kernel, eps=eps)

    out2d = pl.pallas_call(
        kernel,
        out_shape=jax.ShapeDtypeStruct((M_pad, H), out_dtype),
        grid=(M_pad // rt,),
        in_specs=[
            pl.BlockSpec((rt, H), lambda i: (i, 0)),   # x tile
            pl.BlockSpec((rt, H), lambda i: (i, 0)),   # residual tile
            pl.BlockSpec((H, H), lambda i: (0, 0)),    # weight (whole, [out, in])
            pl.BlockSpec((1, H), lambda i: (0, 0)),    # bias
            pl.BlockSpec((1, H), lambda i: (0, 0)),    # LN weight
            pl.BlockSpec((1, H), lambda i: (0, 0)),    # LN bias
        ],
        out_specs=pl.BlockSpec((rt, H), lambda i: (i, 0)),
        compiler_params=pltpu.CompilerParams(
            dimension_semantics=("parallel",),
            vmem_limit_bytes=vmem_limit_bytes,
        ),
    )(x2d, r2d, w, b2d, g2d, beta2d)

    if M_pad != M:
        out2d = out2d[:M]
    return out2d.reshape(B, S, H)


def _reference(hidden_states, input_tensor, weight, bias, ln_weight, ln_bias, eps=1e-12):
    y = jnp.einsum("bsh,oh->bso", hidden_states, weight) + bias
    y = y + input_tensor
    u = jnp.mean(y, axis=-1, keepdims=True)
    s = jnp.mean((y - u) ** 2, axis=-1, keepdims=True)
    yn = (y - u) / jnp.sqrt(s + eps)
    return ln_weight * yn + ln_bias


if __name__ == "__main__":
    B, S, H = 2, 8, 32

    key = jax.random.PRNGKey(0)
    k1, k2, k3, k4 = jax.random.split(key, 4)

    hidden_states = jax.random.normal(k1, (B, S, H), dtype=jnp.float32)
    input_tensor = jax.random.normal(k2, (B, S, H), dtype=jnp.float32)

    # Deterministic parameter init (synthetic, matches module __init__ shapes).
    dense_weight = jax.random.normal(k3, (H, H), dtype=jnp.float32) * (1.0 / jnp.sqrt(H))
    dense_bias = jax.random.normal(k4, (H,), dtype=jnp.float32) * 0.02
    ln_weight = jnp.ones((H,), dtype=jnp.float32)
    ln_bias = jnp.zeros((H,), dtype=jnp.float32)

    ref = _reference(hidden_states, input_tensor, dense_weight, dense_bias,
                     ln_weight, ln_bias)

    # 1) Full-precision path: tight check of the fused kernel math.
    out_f32 = self_output(hidden_states, input_tensor, dense_weight, dense_bias,
                          ln_weight, ln_bias, matmul_dtype=None)
    out_f32 = jax.block_until_ready(out_f32)
    assert out_f32.shape == (B, S, H)
    assert jnp.allclose(out_f32, ref, atol=1e-5, rtol=1e-5), "f32 path mismatch vs reference"

    # 2) Default bf16-matmul path (f32 accumulation + f32 LN epilogue): looser tolerance.
    out_bf16 = self_output(hidden_states, input_tensor, dense_weight, dense_bias,
                           ln_weight, ln_bias)
    out_bf16 = jax.block_until_ready(out_bf16)
    assert out_bf16.shape == (B, S, H)
    assert jnp.allclose(out_bf16, ref, atol=3e-2, rtol=3e-2), "bf16 path mismatch vs reference"

    print("KERNEL_OK")
</pallas_src>

<mosaic_0001>
module attributes {stable_mosaic.version = 11 : i64} {
  func.func @_self_output_kernel(%arg0: i32, %arg1: memref<16x32xf32, #tpu.memory_space<vmem>>, %arg2: memref<16x32xf32, #tpu.memory_space<vmem>>, %arg3: memref<32x32xf32, #tpu.memory_space<vmem>>, %arg4: memref<1x32xf32, #tpu.memory_space<vmem>>, %arg5: memref<1x32xf32, #tpu.memory_space<vmem>>, %arg6: memref<1x32xf32, #tpu.memory_space<vmem>>, %arg7: memref<16x32xf32, #tpu.memory_space<vmem>>) attributes {dimension_semantics = [#tpu.dimension_semantics<parallel>], iteration_bounds = array<i64: 1>, scalar_prefetch = 0 : i64, scratch_operands = 0 : i64, tpu.core_type = #tpu.core_type<tc>, window_params = [{transform_indices = @transform_0, window_bounds = array<i64: 16, 32>}, {transform_indices = @transform_1, window_bounds = array<i64: 16, 32>}, {pipeline_mode = #tpu.pipeline_mode<synchronous>, transform_indices = @transform_2, window_bounds = array<i64: 32, 32>}, {pipeline_mode = #tpu.pipeline_mode<synchronous>, transform_indices = @transform_3, window_bounds = array<i64: 1, 32>}, {pipeline_mode = #tpu.pipeline_mode<synchronous>, transform_indices = @transform_4, window_bounds = array<i64: 1, 32>}, {pipeline_mode = #tpu.pipeline_mode<synchronous>, transform_indices = @transform_5, window_bounds = array<i64: 1, 32>}, {transform_indices = @transform_6, window_bounds = array<i64: 16, 32>}]} {
    %c0 = arith.constant 0 : index
    %c0_0 = arith.constant 0 : index
    %0 = vector.load %arg1[%c0, %c0_0] : memref<16x32xf32, #tpu.memory_space<vmem>>, vector<16x32xf32>
    %c0_1 = arith.constant 0 : index
    %c0_2 = arith.constant 0 : index
    %1 = vector.load %arg3[%c0_1, %c0_2] : memref<32x32xf32, #tpu.memory_space<vmem>>, vector<32x32xf32>
    %cst = arith.constant dense<0.000000e+00> : vector<16x32xf32>
    %2 = tpu.matmul %0, %1, %cst {dimension_numbers = #tpu.dot_dimension_numbers<[1], [1], [0], [0], [0, 0, 1, 0], [], []>} : vector<16x32xf32>, vector<32x32xf32>, vector<16x32xf32> -> vector<16x32xf32>
    %c0_3 = arith.constant 0 : index
    %c0_4 = arith.constant 0 : index
    %3 = vector.load %arg4[%c0_3, %c0_4] : memref<1x32xf32, #tpu.memory_space<vmem>>, vector<1x32xf32>
    %4 = vector.broadcast %3 : vector<1x32xf32> to vector<16x32xf32>
    %5 = arith.addf %2, %4 : vector<16x32xf32>
    %c0_5 = arith.constant 0 : index
    %c0_6 = arith.constant 0 : index
    %6 = vector.load %arg2[%c0_5, %c0_6] : memref<16x32xf32, #tpu.memory_space<vmem>>, vector<16x32xf32>
    %7 = arith.addf %5, %6 : vector<16x32xf32>
    %cst_7 = arith.constant dense<0.000000e+00> : vector<16xf32>
    %8 = vector.multi_reduction <add>, %7, %cst_7 [1] : vector<16x32xf32> to vector<16xf32>
    %9 = vector.shape_cast %8 : vector<16xf32> to vector<16x1xf32>
    %cst_8 = arith.constant 3.125000e-02 : f32
    %10 = vector.broadcast %cst_8 : f32 to vector<16x1xf32>
    %11 = arith.mulf %9, %10 : vector<16x1xf32>
    %12 = arith.mulf %7, %7 : vector<16x32xf32>
    %cst_9 = arith.constant dense<0.000000e+00> : vector<16xf32>
    %13 = vector.multi_reduction <add>, %12, %cst_9 [1] : vector<16x32xf32> to vector<16xf32>
    %14 = vector.shape_cast %13 : vector<16xf32> to vector<16x1xf32>
    %cst_10 = arith.constant 3.125000e-02 : f32
    %15 = vector.broadcast %cst_10 : f32 to vector<16x1xf32>
    %16 = arith.mulf %14, %15 : vector<16x1xf32>
    %17 = arith.mulf %11, %11 : vector<16x1xf32>
    %18 = arith.subf %16, %17 : vector<16x1xf32>
    %cst_11 = arith.constant 0.000000e+00 : f32
    %19 = vector.broadcast %cst_11 : f32 to vector<16x1xf32>
    %20 = arith.maximumf %18, %19 : vector<16x1xf32>
    %cst_12 = arith.constant 9.99999996E-13 : f32
    %21 = vector.broadcast %cst_12 : f32 to vector<16x1xf32>
    %22 = arith.addf %20, %21 : vector<16x1xf32>
    %23 = math.rsqrt %22 : vector<16x1xf32>
    %c0_13 = arith.constant 0 : index
    %c0_14 = arith.constant 0 : index
    %24 = vector.load %arg5[%c0_13, %c0_14] : memref<1x32xf32, #tpu.memory_space<vmem>>, vector<1x32xf32>
    %25 = vector.broadcast %11 : vector<16x1xf32> to vector<16x32xf32>
    %26 = arith.subf %7, %25 : vector<16x32xf32>
    %27 = vector.broadcast %23 : vector<16x1xf32> to vector<16x32xf32>
    %28 = arith.mulf %26, %27 : vector<16x32xf32>
    %29 = vector.broadcast %24 : vector<1x32xf32> to vector<16x32xf32>
    %30 = arith.mulf %29, %28 : vector<16x32xf32>
    %c0_15 = arith.constant 0 : index
    %c0_16 = arith.constant 0 : index
    %31 = vector.load %arg6[%c0_15, %c0_16] : memref<1x32xf32, #tpu.memory_space<vmem>>, vector<1x32xf32>
    %32 = vector.broadcast %31 : vector<1x32xf32> to vector<16x32xf32>
    %33 = arith.addf %30, %32 : vector<16x32xf32>
    %c0_17 = arith.constant 0 : index
    %c0_18 = arith.constant 0 : index
    %34 = vector.load %arg7[%c0_17, %c0_18] : memref<16x32xf32, #tpu.memory_space<vmem>>, vector<16x32xf32>
    tpu.vector_store %arg7[%c0_17, %c0_18], %33 {strides = array<i32>} : memref<16x32xf32, #tpu.memory_space<vmem>>, vector<16x32xf32>,
    return
  }
  func.func @transform_0(%arg0: i32) -> (i32, i32) {
    %c0_i32 = arith.constant 0 : i32
    %c0_i32_0 = arith.constant 0 : i32
    return %arg0, %c0_i32 : i32, i32
  }
  func.func @transform_1(%arg0: i32) -> (i32, i32) {
    %c0_i32 = arith.constant 0 : i32
    %c0_i32_0 = arith.constant 0 : i32
    return %arg0, %c0_i32 : i32, i32
  }
  func.func @transform_2(%arg0: i32) -> (i32, i32) {
    %c0_i32 = arith.constant 0 : i32
    %c0_i32_0 = arith.constant 0 : i32
    %c0_i32_1 = arith.constant 0 : i32
    return %c0_i32, %c0_i32_0 : i32, i32
  }
  func.func @transform_3(%arg0: i32) -> (i32, i32) {
    %c0_i32 = arith.constant 0 : i32
    %c0_i32_0 = arith.constant 0 : i32
    %c0_i32_1 = arith.constant 0 : i32
    return %c0_i32, %c0_i32_0 : i32, i32
  }
  func.func @transform_4(%arg0: i32) -> (i32, i32) {
    %c0_i32 = arith.constant 0 : i32
    %c0_i32_0 = arith.constant 0 : i32
    %c0_i32_1 = arith.constant 0 : i32
    return %c0_i32, %c0_i32_0 : i32, i32
  }
  func.func @transform_5(%arg0: i32) -> (i32, i32) {
    %c0_i32 = arith.constant 0 : i32
    %c0_i32_0 = arith.constant 0 : i32
    %c0_i32_1 = arith.constant 0 : i32
    return %c0_i32, %c0_i32_0 : i32, i32
  }
  func.func @transform_6(%arg0: i32) -> (i32, i32) {
    %c0_i32 = arith.constant 0 : i32
    %c0_i32_0 = arith.constant 0 : i32
    return %arg0, %c0_i32 : i32, i32
  }
}

</mosaic_0001>

<llo_original>
// kernel: tpu_custom_call.1
$region0: #{tpu_custom_call.1}
  #allocation0 [shape = 'u32[]', space=smem, size = 0x4, offset = 0x4, fixed_abs, tag = 'smem constant byte address 0x4 - core index']
  #allocation1 [shape = 'u32[72,128]{1,0:T(1,128)}', space=vmem, size = 0x9000, scoped, tag = 'internal scratch']
  %s0 = inlined_call_operand.hbm [shape: f32[16,32], index: 0, kind: input, shape index: {}]
  %s1 = inlined_call_operand.hbm [shape: f32[16,32], index: 1, kind: input, shape index: {}]
  %s2 = inlined_call_operand.hbm [shape: f32[32,32], index: 2, kind: input, shape index: {}]
  %s3 = inlined_call_operand.vmem [shape: f32[1,32], index: 3, kind: input, shape index: {}]
  %s4 = inlined_call_operand.vmem [shape: f32[1,32], index: 4, kind: input, shape index: {}]
  %s5 = inlined_call_operand.vmem [shape: f32[1,32], index: 5, kind: input, shape index: {}]
  %s6 = inlined_call_operand.hbm [shape: f32[16,32], index: 6, kind: output, shape index: {}]
  %s7 = sld [smem:[#allocation0]]
  $region46: #{tpu_custom_call.1} parent=0
    _
  %s9 = ssub.s32 1, %s7
  %s10 = scalar_select 0, %s9, %s7
  $region1: #{tpu_custom_call.1} parent=0
    #allocation2 [shape = 'u8[8192]{0}', space=vmem, size = 0x2000, scoped, tag = 'input window, operand 0, single buffered']
    #allocation3 [shape = 's32[1]{0}', space=sflag, size = 0x4, scoped, tag = 'scoped memory for tpu_custom_call.1']
    #allocation4 [shape = 's32[1]{0}', space=sflag, size = 0x4, scoped, tag = 'scoped memory for tpu_custom_call.1']
    #allocation5 [shape = 'u8[8192]{0}', space=vmem, size = 0x2000, scoped, tag = 'input window, operand 1, single buffered']
    #allocation6 [shape = 's32[1]{0}', space=sflag, size = 0x4, scoped, tag = 'scoped memory for tpu_custom_call.1']
    #allocation7 [shape = 'u8[16384]{0}', space=vmem, size = 0x4000, scoped, tag = 'input window, operand 2, single buffered']
    #allocation8 [shape = 'u8[8192]{0}', space=vmem, size = 0x2000, scoped, tag = 'output window, operand 0, single buffered']
    %11 = vsyncpa [#allocation3], 0
    %12 = vsyncpa [#allocation6], 0
    %13 = vsyncpa [#allocation4], 0
    // Predicated region
    $region2: #{tpu_custom_call.1} parent=1 // pred_check
      _
    $region3: #{tpu_custom_call.1} parent=1 // pred_check_branch
      %15 = sbr.rel (0) target = $region5
    $region4: #{tpu_custom_call.1} parent=1 // pred_region
      %17 = vsyncadd [#allocation3], 0
      %s18 = sshll.u32 %s0, 4
      %s19 = int_to_ptr.hbm [resolvable:$true] %s18
      %s20 = sshll.u32 [#allocation2], 4
      %s21 = int_to_ptr.vmem [resolvable:$true] %s20
      %26 = dma.hbm_to_vmem [thread:$0]  %s19, 256, %s21, [#allocation3], 128, 128, 8
    $region5: #{tpu_custom_call.1} parent=1 // pred_fallthru
      _
    // Predicated region
    $region6: #{tpu_custom_call.1} parent=1 // pred_check
      _
    $region7: #{tpu_custom_call.1} parent=1 // pred_check_branch
      %28 = sbr.rel (0) target = $region9
    $region8: #{tpu_custom_call.1} parent=1 // pred_region
      %30 = vsyncadd [#allocation6], 0
      %s31 = sshll.u32 %s1, 4
      %s32 = int_to_ptr.hbm [resolvable:$true] %s31
      %s33 = sshll.u32 [#allocation5], 4
      %s34 = int_to_ptr.vmem [resolvable:$true] %s33
      %39 = dma.hbm_to_vmem [thread:$0]  %s32, 256, %s34, [#allocation6], 128, 128, 8
    $region9: #{tpu_custom_call.1} parent=1 // pred_fallthru
      _
    // Predicated region
    $region10: #{tpu_custom_call.1} parent=1 // pred_check
      _
    $region11: #{tpu_custom_call.1} parent=1 // pred_check_branch
      %41 = sbr.rel (0) target = $region13
    $region12: #{tpu_custom_call.1} parent=1 // pred_region
      %43 = vsyncadd [#allocation6], 0
      %s44 = sshll.u32 %s2, 4
      %s45 = int_to_ptr.hbm [resolvable:$true] %s44
      %s46 = sshll.u32 [#allocation7], 4
      %s47 = int_to_ptr.vmem [resolvable:$true] %s46
      %52 = dma.hbm_to_vmem [thread:$0]  %s45, 512, %s47, [#allocation6], 128, 128, 8
    $region13: #{tpu_custom_call.1} parent=1 // pred_fallthru
      _
    // Predicated region
    $region14: #{tpu_custom_call.1} parent=1 // pred_check
      _
    $region15: #{tpu_custom_call.1} parent=1 // pred_check_branch
      %54 = sbr.rel (0) target = $region17
    $region16: #{tpu_custom_call.1} parent=1 // pred_region
      _
    $region17: #{tpu_custom_call.1} parent=1 // pred_fallthru
      _
    // Predicated region
    $region18: #{tpu_custom_call.1} parent=1 // pred_check
      _
    $region19: #{tpu_custom_call.1} parent=1 // pred_check_branch
      %56 = sbr.rel (0) target = $region21
    $region20: #{tpu_custom_call.1} parent=1 // pred_region
      _
    $region21: #{tpu_custom_call.1} parent=1 // pred_fallthru
      _
    // Predicated region
    $region22: #{tpu_custom_call.1} parent=1 // pred_check
      _
    $region23: #{tpu_custom_call.1} parent=1 // pred_check_branch
      %58 = sbr.rel (0) target = $region25
    $region24: #{tpu_custom_call.1} parent=1 // pred_region
      _
    $region25: #{tpu_custom_call.1} parent=1 // pred_fallthru
      _
    // Predicated region
    $region26: #{tpu_custom_call.1} parent=1 // pred_check
      _
    $region27: #{tpu_custom_call.1} parent=1 // pred_check_branch
      %60 = sbr.rel (0) target = $region29
    $region28: #{tpu_custom_call.1} parent=1 // pred_region
      %62 = dma.done [#allocation3], 256
    $region29: #{tpu_custom_call.1} parent=1 // pred_fallthru
      _
    // Predicated region
    $region30: #{tpu_custom_call.1} parent=1 // pred_check
      _
    $region31: #{tpu_custom_call.1} parent=1 // pred_check_branch
      %64 = sbr.rel (0) target = $region33
    $region32: #{tpu_custom_call.1} parent=1 // pred_region
      %66 = dma.done [#allocation6], 256
    $region33: #{tpu_custom_call.1} parent=1 // pred_fallthru
      _
    // Predicated region
    $region34: #{tpu_custom_call.1} parent=1 // pred_check
      _
    $region35: #{tpu_custom_call.1} parent=1 // pred_check_branch
      %68 = sbr.rel (0) target = $region37
    $region36: #{tpu_custom_call.1} parent=1 // pred_region
      %70 = dma.done [#allocation6], 512
    $region37: #{tpu_custom_call.1} parent=1 // pred_fallthru
      _
    %v71 = vld [vmem:[#allocation2] sm:$0xff]
    %v72 = vld [vmem:[#allocation2 + $0x8] sm:$0xff]
    %v73 = vld [vmem:[#allocation7] sm:$0xff]
    %v74 = vld [vmem:[#allocation7 + $0x8] sm:$0xff]
    %v75 = vld [vmem:[#allocation7 + $0x10] sm:$0xff]
    %v76 = vld [vmem:[#allocation7 + $0x18] sm:$0xff]
    %v77 = vld [vmem:[%s3] sm:$0x1]
    %v79 = vperm.slane %v77, 0
    %vm81 = vcmask 261120
    %v83 = vsel %vm81, %v71, 0
    %v86 = vsel %vm81, %v72, 0
    %v89 = vsel %vm81, %v73, 0
    %v92 = vsel %vm81, %v74, 0
    %v95 = vsel %vm81, %v75, 0
    %v98 = vsel %vm81, %v76, 0
    %100 = vmatpush.xpose.msra.mxu0 0.0
    %101 = vmatpush.xpose.msra.mxu0 0.0
    %102 = vmatpush.xpose.msra.mxu0 0.0
    %103 = vmatpush.xpose.msra.mxu0 0.0
    %104 = vmatpush.xpose.msra.mxu0 0.0
    %105 = vmatpush.xpose.msra.mxu0 0.0
    %106 = vmatpush.xpose.msra.mxu0 0.0
    %107 = vmatpush.xpose.msra.mxu0 0.0
    %108 = vmatpush.xpose.msra.mxu0 0.0
    %109 = vmatpush.xpose.msra.mxu0 0.0
    %110 = vmatpush.xpose.msra.mxu0 0.0
    %111 = vmatpush.xpose.msra.mxu0 0.0
    %112 = vmatpush.xpose.msra.mxu0 %v98
    %113 = vmatpush.xpose.msra.mxu0 %v95
    %114 = vmatpush.xpose.msra.mxu0 %v92
    %115 = vmatpush.xpose.msra.mxu0 %v89
    %116 = vmatmul.f32.gmra.mxu0 %v83
    %v117 = vpop.f32.mrf.mxu0
    %v118 = vadd.f32 %v79, %v117
    %119 = vmatmul.f32.gmra.mxu0 %v86
    %v120 = vpop.f32.mrf.mxu0
    %v121 = vadd.f32 %v79, %v120
    %122 = vdwg.mxu0
    %v123 = vld [vmem:[#allocation5] sm:$0xff]
    %v124 = vld [vmem:[#allocation5 + $0x8] sm:$0xff]
    %v125 = vadd.f32 %v118, %v123
    %v126 = vadd.f32 %v121, %v124
    %v127 = vsel %vm81, %v125, 0.0
    %128 = vadd.xlane.f32.xlu0 %v127
    %v129 = vpop.xlane.xlu0 %128
    %v130 = vsel %vm81, %v126, 0.0
    %131 = vadd.xlane.f32.xlu0 %v130
    %v132 = vpop.xlane.xlu0 %131
    %v133 = vmul.f32 %v129, 0.03125
    %v134 = vmul.f32 %v132, 0.03125
    %v135 = vmul.f32 %v125, %v125
    %v136 = vmul.f32 %v126, %v126
    %v137 = vsel %vm81, %v135, 0.0
    %138 = vadd.xlane.f32.xlu0 %v137
    %v139 = vpop.xlane.xlu0 %138
    %v140 = vsel %vm81, %v136, 0.0
    %141 = vadd.xlane.f32.xlu0 %v140
    %v142 = vpop.xlane.xlu0 %141
    %v143 = vmul.f32 %v139, 0.03125
    %v144 = vmul.f32 %v142, 0.03125
    %v145 = vmul.f32 %v133, %v133
    %v146 = vmul.f32 %v134, %v134
    %v147 = vsub.f32 %v143, %v145
    %v148 = vsub.f32 %v144, %v146
    %v149 = vmax.f32 %v147, 0.0
    %v150 = vmax.f32 %v148, 0.0
    %v151 = vadd.f32 %v149, 1e-12
    %v152 = vadd.f32 %v150, 1e-12
    %v153 = vrsqrt.pop %v151
    %v154 = vmul.f32 %v153, %v151
    %v155 = vmul.f32 %v154, %v153
    %v156 = vmul.f32 0.5, %v155
    %v157 = vsub.f32 1.5, %v156
    %v158 = vmul.f32 %v153, %v157
    %vm159 = vweird.f32 %v151
    %vm160 = vweird.f32 %v153
    %vm161 = vmor %vm159, %vm160
    %v162 = vsel %vm161, %v153, %v158
    %v163 = vrsqrt.pop %v152
    %v164 = vmul.f32 %v163, %v152
    %v165 = vmul.f32 %v164, %v163
    %v166 = vmul.f32 0.5, %v165
    %v167 = vsub.f32 1.5, %v166
    %v168 = vmul.f32 %v163, %v167
    %vm169 = vweird.f32 %v152
    %vm170 = vweird.f32 %v163
    %vm171 = vmor %vm169, %vm170
    %v172 = vsel %vm171, %v163, %v168
    %v173 = vld [vmem:[%s4] sm:$0x1]
    %v174 = vsub.f32 %v125, %v133
    %v175 = vsub.f32 %v126, %v134
    %v176 = vmul.f32 %v174, %v162
    %v177 = vmul.f32 %v175, %v172
    %v179 = vperm.slane %v173, 0
    %v181 = vmul.f32 %v179, %v176
    %v182 = vmul.f32 %v179, %v177
    %v183 = vld [vmem:[%s5] sm:$0x1]
    %v185 = vperm.slane %v183, 0
    %v187 = vadd.f32 %v181, %v185
    %v188 = vadd.f32 %v182, %v185
    %189 = vst.msk [vmem:[#allocation8] sm:$0xff] %vm81, %v187
    %190 = vst.msk [vmem:[#allocation8 + $0x8] sm:$0xff] %vm81, %v188
    // Predicated region
    $region38: #{tpu_custom_call.1} parent=1 // pred_check
      _
    $region39: #{tpu_custom_call.1} parent=1 // pred_check_branch
      %192 = sbr.rel (0) target = $region41
    $region40: #{tpu_custom_call.1} parent=1 // pred_region
      %194 = vsyncadd [#allocation4], 0
      %s195 = sshll.u32 [#allocation8], 4
      %s196 = int_to_ptr.vmem [resolvable:$true] %s195
      %s197 = sshll.u32 %s6, 4
      %s198 = int_to_ptr.hbm [resolvable:$true] %s197
      %203 = dma.vmem_to_hbm [thread:$0]  %s196, 256, %s198, [#allocation4], 128, 128, 8
    $region41: #{tpu_custom_call.1} parent=1 // pred_fallthru
      _
    // Predicated region
    $region42: #{tpu_custom_call.1} parent=1 // pred_check
      _
    $region43: #{tpu_custom_call.1} parent=1 // pred_check_branch
      %205 = sbr.rel (0) target = $region45
    $region44: #{tpu_custom_call.1} parent=1 // pred_region
      %207 = dma.done [#allocation4], 256
    $region45: #{tpu_custom_call.1} parent=1 // pred_fallthru
      _
    %208 = vsyncpa [#allocation3], 1
    %209 = vsyncpa [#allocation6], 1
    %210 = vsyncpa [#allocation4], 1

</llo_original>
